<compile_context>
chip_gen: v5e
topology: v5e:2x2
jax: 0.10.0
libtpu: 0.0.40
codegen_flags: <defaults>
</compile_context>

<pallas_src>
from functools import partial

import jax
import jax.numpy as jnp
from jax.experimental import pallas as pl
from jax.experimental.pallas import tpu as pltpu

LANE = 128
_LANE_WIDTH_CANDIDATES = (4096, 2048, 1024, 512, 256, 128)


def _chip_generation():
    """Best-effort TPU generation (5 / 6 / 7) from the device kind string."""
    try:
        kind = jax.devices()[0].device_kind.lower()
    except Exception:
        return None
    if "v7" in kind or "tpu7" in kind:
        return 7
    if "v6" in kind:
        return 6
    if "v5" in kind:
        return 5
    return None


def _coeffs(alpha1, alpha2, center, width):
    half_width = width / 2.0
    x1 = center - half_width
    x2 = center + half_width
    b1 = -(1.0 + alpha1 * x1)
    b2 = 1.0 - alpha1 * x2          # intentionally alpha1, mirrors the PyTorch source
    m3 = 1.0 / half_width
    b3 = center + m3 * center
    return x1, x2, b1, b2, m3, b3


def _liht_formula(x, alpha1, alpha2, center, width):
    x1, x2, b1, b2, m3, b3 = _coeffs(alpha1, alpha2, center, width)
    return jnp.where(x < x1, alpha1 * x + b1,
                     jnp.where(x > x2, alpha2 * x + b2, m3 * x + b3))


def _liht_kernel(x_ref, o_ref, *, alpha1, alpha2, x1, x2, b1, b2, m3, b3,
                 compute_dtype):
    x = x_ref[...].astype(compute_dtype)
    c = lambda v: jnp.asarray(v, dtype=compute_dtype)
    lt = x < c(x1)
    gt = x > c(x2)
    # Select slope & intercept first, then one FMA (fewer VPU ops than 3 lines + wheres).
    if alpha1 == alpha2:                       # static specialization (default case)
        slope = jnp.where(lt | gt, c(alpha1), c(m3))
    else:
        slope = jnp.where(lt, c(alpha1), jnp.where(gt, c(alpha2), c(m3)))
    bias = jnp.where(lt, c(b1), jnp.where(gt, c(b2), c(b3)))
    o_ref[...] = (slope * x + bias).astype(o_ref.dtype)


def liht(x, alpha1=0.0, alpha2=0.0, center=0.0, width=0.5, *, donate_input=False):
    orig_shape = x.shape
    dtype = x.dtype
    itemsize = jnp.dtype(dtype).itemsize
    n = x.size
    gen = _chip_generation()

    x1, x2, b1, b2, m3, b3 = _coeffs(alpha1, alpha2, center, width)

    # bf16-native math on chips with a bf16 VPU (v6e/v7x); upcast to f32 elsewhere.
    if dtype == jnp.bfloat16 and gen not in (6, 7):
        compute_dtype = jnp.float32
    else:
        compute_dtype = dtype

    flat = x.reshape(-1)
    n_main = (n // LANE) * LANE
    if n_main == 0:
        # Fewer than one 128-lane row: launch overhead dominates; plain jnp is cheaper.
        out = _liht_formula(flat.astype(compute_dtype), alpha1, alpha2, center, width)
        return out.astype(dtype).reshape(orig_shape)

    # ---- lane-dense 2D view of the 128-divisible prefix (no pad copy) ----
    sublane_mult = max(8, 32 // itemsize)      # f32 -> 8, bf16 -> 16, int8/fp8 -> 32
    width_cols = LANE
    for w in _LANE_WIDTH_CANDIDATES:           # widest first
        if n_main % w == 0 and n_main // w >= sublane_mult:
            width_cols = w
            break
    rows = n_main // width_cols
    main = flat if n_main == n else flat[:n_main]
    main2d = main.reshape(rows, width_cols)

    # ---- generation-aware block sizing ----
    target_block_bytes = (4 << 20) if gen == 7 else (2 << 20)
    min_grid_steps = 4 if gen == 7 else 1      # shard rows across v7x's 2 TensorCores

    row_bytes = width_cols * itemsize
    if rows < sublane_mult:
        row_tile = rows                        # full-dim block (allowed by (8,128) rule)
    else:
        row_tile = min(rows, max(sublane_mult,
                                 (target_block_bytes // row_bytes)
                                 // sublane_mult * sublane_mult))
        row_tile = max(sublane_mult, row_tile // sublane_mult * sublane_mult)
        if min_grid_steps > 1:
            cap = max(sublane_mult,
                      pl.cdiv(rows, min_grid_steps) // sublane_mult * sublane_mult)
            row_tile = min(row_tile, cap)
    grid = (pl.cdiv(rows, row_tile),)          # ragged final block handled by Pallas

    block_bytes = row_tile * width_cols * itemsize
    # in + out, each double-buffered, plus headroom for compiler-internal scratch.
    vmem_limit = min(int(4 * block_bytes + (8 << 20)), 48 << 20)

    kernel = partial(
        _liht_kernel,
        alpha1=alpha1, alpha2=alpha2,
        x1=x1, x2=x2, b1=b1, b2=b2, m3=m3, b3=b3,
        compute_dtype=compute_dtype,
    )

    cost = pl.CostEstimate(
        flops=10 * n_main,                     # ~2 cmp + ~4 select + mul + add per elem
        transcendentals=0,
        bytes_accessed=2 * n_main * itemsize,
    )

    out_main = pl.pallas_call(
        kernel,
        out_shape=jax.ShapeDtypeStruct((rows, width_cols), dtype),
        grid_spec=pl.GridSpec(
            grid=grid,
            in_specs=[pl.BlockSpec((row_tile, width_cols), lambda i: (i, 0))],
            out_specs=pl.BlockSpec((row_tile, width_cols), lambda i: (i, 0)),
        ),
        compiler_params=pltpu.CompilerParams(
            dimension_semantics=("parallel",),
            vmem_limit_bytes=vmem_limit,
        ),
        cost_estimate=cost,
        # Only alias when the caller donates x and no tail stitching is needed.
        input_output_aliases=({0: 0} if (donate_input and n_main == n) else {}),
    )(main2d)

    out_flat = out_main.reshape(-1)
    if n_main != n:
        # Tiny tail (< 128 elements): plain jnp, avoids full-array pad + slice passes.
        tail = flat[n_main:].astype(compute_dtype)
        out_tail = _liht_formula(tail, alpha1, alpha2, center, width).astype(dtype)
        out_flat = jnp.concatenate([out_flat, out_tail])
    return out_flat.reshape(orig_shape)


def _liht_ref(x, alpha1=0.0, alpha2=0.0, center=0.0, width=0.5):
    # Plain-JAX reference mirroring the PyTorch forward.
    return _liht_formula(x, alpha1, alpha2, center, width)


if __name__ == "__main__":
    key = jax.random.PRNGKey(0)

    # Primary: NCHW-shaped input, like a typical activation-map input to the module.
    x = jax.random.normal(key, (2, 4, 16, 16), dtype=jnp.float32)
    out = jax.block_until_ready(liht(x))
    ref = _liht_ref(x)
    assert out.shape == x.shape and out.dtype == x.dtype
    assert jnp.allclose(out, ref, atol=1e-6, rtol=1e-6)

    # Non-default parameters (exercises all three branches with distinct slopes).
    out2 = jax.block_until_ready(
        liht(x, alpha1=0.1, alpha2=0.2, center=0.1, width=1.0))
    ref2 = _liht_ref(x, alpha1=0.1, alpha2=0.2, center=0.1, width=1.0)
    assert jnp.allclose(out2, ref2, atol=1e-6, rtol=1e-6)

    # Tiny odd element count (< 128) -> pure-jnp fallback path.
    x_odd = jax.random.normal(jax.random.PRNGKey(1), (3, 5, 7), dtype=jnp.float32)
    out3 = jax.block_until_ready(liht(x_odd))
    assert jnp.allclose(out3, _liht_ref(x_odd), atol=1e-6, rtol=1e-6)

    # bf16 input -> exercises dtype-aware sublane tiling / bf16-native math (v6e/v7x).
    x_bf16 = jax.random.normal(jax.random.PRNGKey(2), (2, 4, 16, 16), dtype=jnp.bfloat16)
    out4 = jax.block_until_ready(liht(x_bf16))
    assert out4.dtype == jnp.bfloat16
    assert jnp.allclose(out4.astype(jnp.float32),
                        _liht_ref(x_bf16).astype(jnp.float32), atol=2e-2, rtol=2e-2)

    # Non-multiple-of-128 size with a 128-divisible prefix -> kernel prefix + jnp tail.
    x_mix = jax.random.normal(jax.random.PRNGKey(3), (5, 130), dtype=jnp.float32)
    out5 = jax.block_until_ready(liht(x_mix, alpha1=0.05, center=0.2, width=0.8))
    assert jnp.allclose(out5, _liht_ref(x_mix, alpha1=0.05, center=0.2, width=0.8),
                        atol=1e-6, rtol=1e-6)

    print("KERNEL_OK")
</pallas_src>

<mosaic_0001>
module attributes {stable_mosaic.version = 11 : i64} {
  func.func @_liht_kernel(%arg0: i32, %arg1: memref<8x256xf32, #tpu.memory_space<vmem>>, %arg2: memref<8x256xf32, #tpu.memory_space<vmem>>) attributes {dimension_semantics = [#tpu.dimension_semantics<parallel>], iteration_bounds = array<i64: 1>, scalar_prefetch = 0 : i64, scratch_operands = 0 : i64, tpu.core_type = #tpu.core_type<tc>, window_params = [{transform_indices = @transform_0, window_bounds = array<i64: 8, 256>}, {transform_indices = @transform_1, window_bounds = array<i64: 8, 256>}]} {
    %c0 = arith.constant 0 : index
    %c0_0 = arith.constant 0 : index
    %0 = vector.load %arg1[%c0, %c0_0] : memref<8x256xf32, #tpu.memory_space<vmem>>, vector<8x256xf32>
    %cst = arith.constant -2.500000e-01 : f32
    %1 = vector.broadcast %cst : f32 to vector<8x256xf32>
    %2 = arith.cmpf olt, %0, %1 : vector<8x256xf32>
    %cst_1 = arith.constant 2.500000e-01 : f32
    %3 = vector.broadcast %cst_1 : f32 to vector<8x256xf32>
    %4 = arith.cmpf ogt, %0, %3 : vector<8x256xf32>
    %5 = arith.ori %2, %4 : vector<8x256xi1>
    %cst_2 = arith.constant 0.000000e+00 : f32
    %cst_3 = arith.constant 4.000000e+00 : f32
    %6 = vector.broadcast %cst_2 : f32 to vector<8x256xf32>
    %7 = vector.broadcast %cst_3 : f32 to vector<8x256xf32>
    %8 = arith.select %5, %6, %7 : vector<8x256xi1>, vector<8x256xf32>
    %cst_4 = arith.constant 1.000000e+00 : f32
    %cst_5 = arith.constant 0.000000e+00 : f32
    %9 = vector.broadcast %cst_4 : f32 to vector<8x256xf32>
    %10 = vector.broadcast %cst_5 : f32 to vector<8x256xf32>
    %11 = arith.select %4, %9, %10 : vector<8x256xi1>, vector<8x256xf32>
    %cst_6 = arith.constant -1.000000e+00 : f32
    %12 = vector.broadcast %cst_6 : f32 to vector<8x256xf32>
    %13 = arith.select %2, %12, %11 : vector<8x256xi1>, vector<8x256xf32>
    %14 = arith.mulf %8, %0 : vector<8x256xf32>
    %15 = arith.addf %14, %13 : vector<8x256xf32>
    %c0_7 = arith.constant 0 : index
    %c0_8 = arith.constant 0 : index
    %16 = vector.load %arg2[%c0_7, %c0_8] : memref<8x256xf32, #tpu.memory_space<vmem>>, vector<8x256xf32>
    tpu.vector_store %arg2[%c0_7, %c0_8], %15 {strides = array<i32>} : memref<8x256xf32, #tpu.memory_space<vmem>>, vector<8x256xf32>,
    return
  }
  func.func @transform_0(%arg0: i32) -> (i32, i32) {
    %c0_i32 = arith.constant 0 : i32
    %c0_i32_0 = arith.constant 0 : i32
    return %arg0, %c0_i32 : i32, i32
  }
  func.func @transform_1(%arg0: i32) -> (i32, i32) {
    %c0_i32 = arith.constant 0 : i32
    %c0_i32_0 = arith.constant 0 : i32
    return %arg0, %c0_i32 : i32, i32
  }
}

</mosaic_0001>

<llo_original>
// kernel: tpu_custom_call.1
$region0: #{tpu_custom_call.1}
  #allocation0 [shape = 'u32[]', space=smem, size = 0x4, offset = 0x4, fixed_abs, tag = 'smem constant byte address 0x4 - core index']
  #allocation1 [shape = 'u32[72,128]{1,0:T(1,128)}', space=vmem, size = 0x9000, scoped, tag = 'internal scratch']
  %s0 = inlined_call_operand.hbm [shape: f32[8,256], index: 0, kind: input, shape index: {}]
  %s1 = inlined_call_operand.hbm [shape: f32[8,256], index: 1, kind: output, shape index: {}]
  %s2 = sld [smem:[#allocation0]]
  $region18: #{tpu_custom_call.1} parent=0
    _
  %s4 = ssub.s32 1, %s2
  %s5 = scalar_select 0, %s4, %s2
  $region1: #{tpu_custom_call.1} parent=0
    #allocation2 [shape = 'u8[8192]{0}', space=vmem, size = 0x2000, scoped, tag = 'input window, operand 0, single buffered']
    #allocation3 [shape = 's32[1]{0}', space=sflag, size = 0x4, scoped, tag = 'scoped memory for tpu_custom_call.1']
    #allocation4 [shape = 's32[1]{0}', space=sflag, size = 0x4, scoped, tag = 'scoped memory for tpu_custom_call.1']
    #allocation5 [shape = 'u8[8192]{0}', space=vmem, size = 0x2000, scoped, tag = 'output window, operand 0, single buffered']
    %6 = vsyncpa [#allocation3], 0
    %7 = vsyncpa [#allocation4], 0
    // Predicated region
    $region2: #{tpu_custom_call.1} parent=1 // pred_check
      _
    $region3: #{tpu_custom_call.1} parent=1 // pred_check_branch
      %9 = sbr.rel (0) target = $region5
    $region4: #{tpu_custom_call.1} parent=1 // pred_region
      %11 = vsyncadd [#allocation3], 0
      %s13 = sshll.u32 %s0, 4
      %s14 = int_to_ptr.hbm [resolvable:$true] %s13
      %s15 = sshll.u32 [#allocation2], 4
      %s16 = int_to_ptr.vmem [resolvable:$true] %s15
      %18 = dma.hbm_to_vmem [thread:$0]  %s14, 256, %s16, [#allocation3]
    $region5: #{tpu_custom_call.1} parent=1 // pred_fallthru
      _
    // Predicated region
    $region6: #{tpu_custom_call.1} parent=1 // pred_check
      _
    $region7: #{tpu_custom_call.1} parent=1 // pred_check_branch
      %20 = sbr.rel (0) target = $region9
    $region8: #{tpu_custom_call.1} parent=1 // pred_region
      %22 = dma.done [#allocation3], 256
    $region9: #{tpu_custom_call.1} parent=1 // pred_fallthru
      _
    %v23 = vld [vmem:[#allocation2] sm:$0xff]
    %v24 = vld [vmem:[#allocation2 + $0x8] sm:$0xff]
    %vm25 = vcmp.lt.f32.partialorder %v23, -0.25
    %vm26 = vcmp.lt.f32.partialorder %v24, -0.25
    %vm27 = vcmp.gt.f32.partialorder %v23, 0.25
    %vm28 = vcmp.gt.f32.partialorder %v24, 0.25
    %vm29 = vmor %vm25, %vm27
    %vm30 = vmor %vm26, %vm28
    %v31 = vsel %vm29, 0.0, 4.0
    %v32 = vsel %vm30, 0.0, 4.0
    %v33 = vsel %vm27, 1.0, 0.0
    %v34 = vsel %vm28, 1.0, 0.0
    %v35 = vsel %vm25, -1.0, %v33
    %v36 = vsel %vm26, -1.0, %v34
    %v37 = vmul.f32 %v31, %v23
    %v38 = vmul.f32 %v32, %v24
    %v39 = vadd.f32 %v37, %v35
    %v40 = vadd.f32 %v38, %v36
    %41 = vst [vmem:[#allocation5] sm:$0xff] %v39
    %42 = vst [vmem:[#allocation5 + $0x8] sm:$0xff] %v40
    // Predicated region
    $region10: #{tpu_custom_call.1} parent=1 // pred_check
      _
    $region11: #{tpu_custom_call.1} parent=1 // pred_check_branch
      %44 = sbr.rel (0) target = $region13
    $region12: #{tpu_custom_call.1} parent=1 // pred_region
      %46 = vsyncadd [#allocation4], 0
      %s48 = sshll.u32 [#allocation5], 4
      %s49 = int_to_ptr.vmem [resolvable:$true] %s48
      %s50 = sshll.u32 %s1, 4
      %s51 = int_to_ptr.hbm [resolvable:$true] %s50
      %53 = dma.vmem_to_hbm [thread:$0]  %s49, 256, %s51, [#allocation4]
    $region13: #{tpu_custom_call.1} parent=1 // pred_fallthru
      _
    // Predicated region
    $region14: #{tpu_custom_call.1} parent=1 // pred_check
      _
    $region15: #{tpu_custom_call.1} parent=1 // pred_check_branch
      %55 = sbr.rel (0) target = $region17
    $region16: #{tpu_custom_call.1} parent=1 // pred_region
      %57 = dma.done [#allocation4], 256
    $region17: #{tpu_custom_call.1} parent=1 // pred_fallthru
      _
    %58 = vsyncpa [#allocation3], 1
    %59 = vsyncpa [#allocation4], 1

</llo_original>
